<compile_context>
chip_gen: v5e
topology: v5e:2x2
jax: 0.10.0
libtpu: 0.0.40
codegen_flags: <defaults>
</compile_context>

<pallas_src>
import functools

import jax
import jax.numpy as jnp
import numpy as np
from jax.experimental import pallas as pl
from jax.experimental.pallas import tpu as pltpu


_PARAM_ORDER = ("w1", "b1", "w2", "b2",
                "fc1_w", "fc1_b", "fc2_w", "fc2_b", "fc3_w", "fc3_b")


# ---------------------------------------------------------------------------
# Fused Pallas kernel (whole forward pass, one grid step per batch tile)
# ---------------------------------------------------------------------------
def _fused_cnn_kernel(x_ref, w1_ref, b1_ref, w2_ref, b2_ref,
                      fc1w_ref, fc1b_ref, fc2w_ref, fc2b_ref, fc3w_ref, fc3b_ref,
                      o_ref,
                      xc1_ref, y1_ref, cm1_ref, p1_ref,
                      xc2_ref, y2_ref, cm2_ref, p2_ref,
                      *, cin, c1, c2, k, h, w, nb):
    f32 = jnp.float32
    wcin = w * cin
    wo1 = w - k + 1
    hp1, wp1 = (h - k + 1) // 2, wo1 // 2
    hs1 = h // 2                       # per-image row stride after pool1
    wp2 = (wp1 - k + 1) // 2
    hp2 = (hp1 - k + 1) // 2
    hs2 = hs1 // 2                     # per-image row stride after pool2
    nh, nh1, nh2 = nb * h, nb * hs1, nb * hs2
    wc1 = wp1 * c1

    # ---- conv1: k shifted row-slabs -> one (nh, k*w*cin) operand, single MXU matmul ----
    for ki in range(k):
        xc1_ref[0:nh - ki, ki * wcin:(ki + 1) * wcin] = x_ref[ki:nh, :]
    y1_ref[...] = jnp.maximum(
        jnp.dot(xc1_ref[...], w1_ref[...], preferred_element_type=f32)
        + b1_ref[...], 0.0)

    # ---- pool1 (2x2 / stride 2): lane halves are [even-w | odd-w] by construction ----
    cm1_ref[...] = jnp.maximum(y1_ref[:, 0:wp1 * c1], y1_ref[:, wp1 * c1:2 * wp1 * c1])
    p1_ref[...] = jnp.maximum(cm1_ref[pl.ds(0, nh1, 2), :],
                              cm1_ref[pl.ds(1, nh1, 2), :]).astype(p1_ref.dtype)

    # ---- conv2: same fused shifted-slab matmul on the pooled activations ----
    for ki in range(k):
        xc2_ref[0:nh1 - ki, ki * wc1:(ki + 1) * wc1] = p1_ref[ki:nh1, :]
    y2_ref[...] = jnp.maximum(
        jnp.dot(xc2_ref[...], w2_ref[...], preferred_element_type=f32)
        + b2_ref[...], 0.0)

    # ---- pool2 ----
    cm2_ref[...] = jnp.maximum(y2_ref[:, 0:wp2 * c2], y2_ref[:, wp2 * c2:2 * wp2 * c2])
    p2_ref[...] = jnp.maximum(cm2_ref[pl.ds(0, nh2, 2), :],
                              cm2_ref[pl.ds(1, nh2, 2), :])

    # ---- fc1 as a sum over the hp2 pooled rows (flatten fused away) -> fc2 -> fc3 ----
    acc = jnp.dot(p2_ref[pl.ds(0, nb, hs2), :], fc1w_ref[0],
                  preferred_element_type=f32) + fc1b_ref[...]
    for hh in range(1, hp2):
        acc = acc + jnp.dot(p2_ref[pl.ds(hh, nb, hs2), :], fc1w_ref[hh],
                            preferred_element_type=f32)
    h1 = jnp.maximum(acc, 0.0)
    h2 = jnp.maximum(jnp.dot(h1, fc2w_ref[...], preferred_element_type=f32)
                     + fc2b_ref[...], 0.0)
    o_ref[...] = (jnp.dot(h2, fc3w_ref[...], preferred_element_type=f32)
                  + fc3b_ref[...]).astype(o_ref.dtype)


# ---------------------------------------------------------------------------
# One-time parameter preparation (plain numpy, outside the hot path)
# ---------------------------------------------------------------------------
def _toeplitz_conv_weight_fused(w_oihw, in_width):
    """Merged block-Toeplitz weight for the fused shifted-slab conv matmul.

    Contraction dim q = ki*in_width*cin + wcol*cin + ci matches
    Xcat[r, q] = x[r + ki, wcol, ci].  Output columns contain only the 2*(wo//2)
    w-positions that survive the following floor-mode 2x2 pool, permuted
    [even-w block | odd-w block] so the pool's column max is one full-width max.
    """
    w_np = np.asarray(w_oihw, np.float32)
    cout, cin, k, _ = w_np.shape
    wo = in_width - k + 1
    wp = wo // 2
    t = np.zeros((k * in_width * cin, 2 * wp * cout), np.float32)
    for wout in range(2 * wp):
        col0 = (wout // 2) * cout + (0 if wout % 2 == 0 else wp * cout)
        for ki in range(k):
            for kj in range(k):
                row0 = ki * in_width * cin + (wout + kj) * cin
                t[row0:row0 + cin, col0:col0 + cout] = w_np[:, :, ki, kj].T
    return t


def _fc1_row_blocks(fc1_w, c2, hp2, wp2):
    """fc1 weight regrouped as (hp2, wp2*c2, hidden): block h has lanes in (w, c)
    order, absorbing torch's (c, h, w) flatten order at prepare time."""
    w = np.asarray(fc1_w, np.float32)               # (c2*hp2*wp2, hidden)
    blocks = np.zeros((hp2, wp2 * c2, w.shape[1]), np.float32)
    for hh in range(hp2):
        for ww in range(wp2):
            for cc in range(c2):
                blocks[hh, ww * c2 + cc, :] = w[cc * hp2 * wp2 + hh * wp2 + ww, :]
    return blocks


def prepare_fused_params(params, input_hw):
    """Convert torch-convention params into the fused-kernel layout (done once)."""
    h, w = input_hw
    conv1_w = np.asarray(params["conv1_w"], np.float32)
    conv2_w = np.asarray(params["conv2_w"], np.float32)
    c1, _, k, _ = conv1_w.shape
    c2 = conv2_w.shape[0]
    wp1 = (w - k + 1) // 2
    hp1 = (h - k + 1) // 2
    wp2 = (wp1 - k + 1) // 2
    hp2 = (hp1 - k + 1) // 2
    out_dim = int(np.asarray(params["fc3_w"]).shape[1])

    bf16 = lambda a: jnp.asarray(a, jnp.bfloat16)
    f32 = lambda a: jnp.asarray(a, jnp.float32)
    fused = {
        # conv path: bf16 matmul operands (f32 accumulation in-kernel)
        "w1": bf16(_toeplitz_conv_weight_fused(conv1_w, w)),
        "b1": f32(np.tile(np.asarray(params["conv1_b"], np.float32), 2 * wp1))[None, :],
        "w2": bf16(_toeplitz_conv_weight_fused(conv2_w, wp1)),
        "b2": f32(np.tile(np.asarray(params["conv2_b"], np.float32), 2 * wp2))[None, :],
        # tiny FC head kept f32 (negligible FLOPs, avoids extra rounding)
        "fc1_w": f32(_fc1_row_blocks(params["fc1_w"], c2, hp2, wp2)),
        "fc1_b": f32(params["fc1_b"])[None, :],
        "fc2_w": f32(params["fc2_w"]),
        "fc2_b": f32(params["fc2_b"])[None, :],
        "fc3_w": f32(params["fc3_w"]),
        "fc3_b": f32(params["fc3_b"])[None, :],
    }
    dims = (int(k), int(c1), int(c2), out_dim)
    return fused, dims


# ---------------------------------------------------------------------------
# Forward pass: one pallas_call, batch-tile grid, weights VMEM-resident
# ---------------------------------------------------------------------------
@functools.partial(jax.jit, static_argnames=("dims",))
def simple_cnn_forward(x_nchw, fused, dims):
    k, c1, c2, out_dim = dims
    n, cin, h, w = x_nchw.shape
    # One coarse batch tile for the toy batch (grid of 1 serial step, as recommended
    # for v5e/v6e).  For large batches pick nb as a multiple of 8 sized to VMEM
    # (<= ~2048 images per tile on v7x's 64 MiB) and the grid parallelizes tiles.
    nb = n
    assert n % nb == 0 and h % 4 == 0 and w % 2 == 0
    wo1 = w - k + 1
    wp1, hs1 = wo1 // 2, h // 2
    wp2, hs2 = (wp1 - k + 1) // 2, hs1 // 2

    # Single cheap layout op outside the kernel: NCHW -> row-stacked (N*H, W*Cin).
    # TODO(synk): for non-toy batches accept NHWC upstream to avoid this transpose.
    x2d = jnp.transpose(x_nchw, (0, 2, 3, 1)).reshape(n * h, w * cin).astype(jnp.bfloat16)

    kernel = functools.partial(_fused_cnn_kernel, cin=cin, c1=c1, c2=c2, k=k,
                               h=h, w=w, nb=nb)
    resident = lambda a: pl.BlockSpec(a.shape, lambda i, nd=a.ndim: (0,) * nd)

    return pl.pallas_call(
        kernel,
        out_shape=jax.ShapeDtypeStruct((n, out_dim), jnp.float32),
        grid_spec=pltpu.PrefetchScalarGridSpec(
            num_scalar_prefetch=0,
            grid=(n // nb,),
            in_specs=[pl.BlockSpec((nb * h, w * cin), lambda i: (i, 0))]
                     + [resident(fused[name]) for name in _PARAM_ORDER],
            out_specs=pl.BlockSpec((nb, out_dim), lambda i: (i, 0)),
            scratch_shapes=[
                pltpu.VMEM((nb * h, k * w * cin), jnp.bfloat16),       # xc1: conv1 operand
                pltpu.VMEM((nb * h, 2 * wp1 * c1), jnp.float32),       # y1 : conv1 act
                pltpu.VMEM((nb * h, wp1 * c1), jnp.float32),           # cm1: col-pair max
                pltpu.VMEM((nb * hs1, wp1 * c1), jnp.bfloat16),        # p1 : pool1 out
                pltpu.VMEM((nb * hs1, k * wp1 * c1), jnp.bfloat16),    # xc2: conv2 operand
                pltpu.VMEM((nb * hs1, 2 * wp2 * c2), jnp.float32),     # y2 : conv2 act
                pltpu.VMEM((nb * hs1, wp2 * c2), jnp.float32),         # cm2: col-pair max
                pltpu.VMEM((nb * hs2, wp2 * c2), jnp.float32),         # p2 : pool2 out
            ]),
        compiler_params=pltpu.CompilerParams(
            dimension_semantics=("parallel",)),
    )(x2d, *[fused[name] for name in _PARAM_ORDER])


# ---------------------------------------------------------------------------
# Pure-JAX reference (for correctness check)
# ---------------------------------------------------------------------------
def reference_forward(x, p):
    def conv(x, w, b):
        y = jax.lax.conv_general_dilated(
            x, w, (1, 1), "VALID", dimension_numbers=("NCHW", "OIHW", "NCHW"))
        return jax.nn.relu(y + b[None, :, None, None])

    def pool(x):
        return jax.lax.reduce_window(
            x, -jnp.inf, jax.lax.max, (1, 1, 2, 2), (1, 1, 2, 2), "VALID")

    x = pool(conv(x, p["conv1_w"], p["conv1_b"]))
    x = pool(conv(x, p["conv2_w"], p["conv2_b"]))
    x = x.reshape(x.shape[0], -1)
    x = jax.nn.relu(x @ p["fc1_w"] + p["fc1_b"])
    x = jax.nn.relu(x @ p["fc2_w"] + p["fc2_b"])
    return x @ p["fc3_w"] + p["fc3_b"]


# ---------------------------------------------------------------------------
# Deterministic parameter init + driver
# ---------------------------------------------------------------------------
def init_params(key, input_channel, num_filters, kernel_size, input_dim,
                hidden_dims, output_dim):
    ks = jax.random.split(key, 10)

    def w_init(k, shape, fan_in):
        return (jax.random.normal(k, shape, jnp.float32) / np.sqrt(fan_in)).astype(jnp.float32)

    p = {}
    p["conv1_w"] = w_init(ks[0], (num_filters[0], input_channel, kernel_size, kernel_size),
                          input_channel * kernel_size * kernel_size)
    p["conv1_b"] = w_init(ks[1], (num_filters[0],), input_channel * kernel_size ** 2)
    p["conv2_w"] = w_init(ks[2], (num_filters[1], num_filters[0], kernel_size, kernel_size),
                          num_filters[0] * kernel_size * kernel_size)
    p["conv2_b"] = w_init(ks[3], (num_filters[1],), num_filters[0] * kernel_size ** 2)
    # FC weights stored as (in, out) so the kernel is a plain x @ w + b
    p["fc1_w"] = w_init(ks[4], (input_dim, hidden_dims[0]), input_dim)
    p["fc1_b"] = w_init(ks[5], (hidden_dims[0],), input_dim)
    p["fc2_w"] = w_init(ks[6], (hidden_dims[0], hidden_dims[1]), hidden_dims[0])
    p["fc2_b"] = w_init(ks[7], (hidden_dims[1],), hidden_dims[0])
    p["fc3_w"] = w_init(ks[8], (hidden_dims[1], output_dim), hidden_dims[1])
    p["fc3_b"] = w_init(ks[9], (output_dim,), hidden_dims[1])
    return p


if __name__ == "__main__":
    # Module config: 4 input channels, filters [8, 8], kernel 3, 16x16 input.
    # 16 -> conv(3) 14 -> pool 7 -> conv(3) 5 -> pool 2  => input_dim = 8*2*2 = 32
    input_channel = 4
    num_filters = [8, 8]
    kernel_size = 3
    hidden_dims = [32, 16]
    output_dim = 10
    input_dim = num_filters[1] * 2 * 2  # 32

    key = jax.random.PRNGKey(0)
    k_x, k_p = jax.random.split(key)
    x = jax.random.normal(k_x, (2, input_channel, 16, 16), jnp.float32)
    params = init_params(k_p, input_channel, num_filters, kernel_size,
                         input_dim, hidden_dims, output_dim)

    fused, dims = prepare_fused_params(params, (16, 16))

    out = jax.block_until_ready(simple_cnn_forward(x, fused, dims=dims))
    assert out.shape == (2, output_dim), out.shape

    ref = jax.block_until_ready(reference_forward(x, params))
    # bf16 conv operands with f32 accumulation -> slightly looser tolerance than f32.
    if not np.allclose(np.asarray(out), np.asarray(ref), rtol=2e-2, atol=2e-2):
        err = float(np.max(np.abs(np.asarray(out) - np.asarray(ref))))
        raise AssertionError(f"Pallas output does not match JAX reference (max err {err})")

    print("KERNEL_OK")
</pallas_src>

<mosaic_0001>
module attributes {stable_mosaic.version = 11 : i64} {
  func.func @_fused_cnn_kernel(%arg0: i32, %arg1: memref<32x64xbf16, #tpu.memory_space<vmem>>, %arg2: memref<192x112xbf16, #tpu.memory_space<vmem>>, %arg3: memref<1x112xf32, #tpu.memory_space<vmem>>, %arg4: memref<168x32xbf16, #tpu.memory_space<vmem>>, %arg5: memref<1x32xf32, #tpu.memory_space<vmem>>, %arg6: memref<2x16x32xf32, #tpu.memory_space<vmem>>, %arg7: memref<1x32xf32, #tpu.memory_space<vmem>>, %arg8: memref<32x16xf32, #tpu.memory_space<vmem>>, %arg9: memref<1x16xf32, #tpu.memory_space<vmem>>, %arg10: memref<16x10xf32, #tpu.memory_space<vmem>>, %arg11: memref<1x10xf32, #tpu.memory_space<vmem>>, %arg12: memref<2x10xf32, #tpu.memory_space<vmem>>, %arg13: memref<32x192xbf16, #tpu.memory_space<vmem>>, %arg14: memref<32x112xf32, #tpu.memory_space<vmem>>, %arg15: memref<32x56xf32, #tpu.memory_space<vmem>>, %arg16: memref<16x56xbf16, #tpu.memory_space<vmem>>, %arg17: memref<16x168xbf16, #tpu.memory_space<vmem>>, %arg18: memref<16x32xf32, #tpu.memory_space<vmem>>, %arg19: memref<16x16xf32, #tpu.memory_space<vmem>>, %arg20: memref<8x16xf32, #tpu.memory_space<vmem>>) attributes {dimension_semantics = [#tpu.dimension_semantics<parallel>], iteration_bounds = array<i64: 1>, scalar_prefetch = 0 : i64, scratch_operands = 8 : i64, tpu.core_type = #tpu.core_type<tc>, window_params = [{transform_indices = @transform_0, window_bounds = array<i64: 32, 64>}, {pipeline_mode = #tpu.pipeline_mode<synchronous>, transform_indices = @transform_1, window_bounds = array<i64: 192, 112>}, {pipeline_mode = #tpu.pipeline_mode<synchronous>, transform_indices = @transform_2, window_bounds = array<i64: 1, 112>}, {pipeline_mode = #tpu.pipeline_mode<synchronous>, transform_indices = @transform_3, window_bounds = array<i64: 168, 32>}, {pipeline_mode = #tpu.pipeline_mode<synchronous>, transform_indices = @transform_4, window_bounds = array<i64: 1, 32>}, {pipeline_mode = #tpu.pipeline_mode<synchronous>, transform_indices = @transform_5, window_bounds = array<i64: 2, 16, 32>}, {pipeline_mode = #tpu.pipeline_mode<synchronous>, transform_indices = @transform_6, window_bounds = array<i64: 1, 32>}, {pipeline_mode = #tpu.pipeline_mode<synchronous>, transform_indices = @transform_7, window_bounds = array<i64: 32, 16>}, {pipeline_mode = #tpu.pipeline_mode<synchronous>, transform_indices = @transform_8, window_bounds = array<i64: 1, 16>}, {pipeline_mode = #tpu.pipeline_mode<synchronous>, transform_indices = @transform_9, window_bounds = array<i64: 16, 10>}, {pipeline_mode = #tpu.pipeline_mode<synchronous>, transform_indices = @transform_10, window_bounds = array<i64: 1, 10>}, {transform_indices = @transform_11, window_bounds = array<i64: 2, 10>}]} {
    %c0 = arith.constant 0 : index
    %c0_0 = arith.constant 0 : index
    %0 = vector.load %arg1[%c0, %c0_0] : memref<32x64xbf16, #tpu.memory_space<vmem>>, vector<32x64xbf16>
    %c0_1 = arith.constant 0 : index
    %c0_2 = arith.constant 0 : index
    %1 = vector.load %arg13[%c0_1, %c0_2] : memref<32x192xbf16, #tpu.memory_space<vmem>>, vector<32x64xbf16>
    tpu.vector_store %arg13[%c0_1, %c0_2], %0 {strides = array<i32>} : memref<32x192xbf16, #tpu.memory_space<vmem>>, vector<32x64xbf16>,
    %c1 = arith.constant 1 : index
    %c0_3 = arith.constant 0 : index
    %2 = vector.load %arg1[%c1, %c0_3] : memref<32x64xbf16, #tpu.memory_space<vmem>>, vector<31x64xbf16>
    %c0_4 = arith.constant 0 : index
    %c64 = arith.constant 64 : index
    %3 = vector.load %arg13[%c0_4, %c64] : memref<32x192xbf16, #tpu.memory_space<vmem>>, vector<31x64xbf16>
    tpu.vector_store %arg13[%c0_4, %c64], %2 {strides = array<i32>} : memref<32x192xbf16, #tpu.memory_space<vmem>>, vector<31x64xbf16>,
    %c2 = arith.constant 2 : index
    %c0_5 = arith.constant 0 : index
    %4 = vector.load %arg1[%c2, %c0_5] : memref<32x64xbf16, #tpu.memory_space<vmem>>, vector<30x64xbf16>
    %c0_6 = arith.constant 0 : index
    %c128 = arith.constant 128 : index
    %5 = vector.load %arg13[%c0_6, %c128] : memref<32x192xbf16, #tpu.memory_space<vmem>>, vector<30x64xbf16>
    tpu.vector_store %arg13[%c0_6, %c128], %4 {strides = array<i32>} : memref<32x192xbf16, #tpu.memory_space<vmem>>, vector<30x64xbf16>,
    %c0_7 = arith.constant 0 : index
    %c0_8 = arith.constant 0 : index
    %6 = vector.load %arg13[%c0_7, %c0_8] : memref<32x192xbf16, #tpu.memory_space<vmem>>, vector<32x192xbf16>
    %c0_9 = arith.constant 0 : index
    %c0_10 = arith.constant 0 : index
    %7 = vector.load %arg2[%c0_9, %c0_10] : memref<192x112xbf16, #tpu.memory_space<vmem>>, vector<192x112xbf16>
    %cst = arith.constant dense<0.000000e+00> : vector<32x112xf32>
    %8 = tpu.matmul %6, %7, %cst {dimension_numbers = #tpu.dot_dimension_numbers<[1], [0], [0], [1], [0, 0, 1, 1], [], []>} : vector<32x192xbf16>, vector<192x112xbf16>, vector<32x112xf32> -> vector<32x112xf32>
    %c0_11 = arith.constant 0 : index
    %c0_12 = arith.constant 0 : index
    %9 = vector.load %arg3[%c0_11, %c0_12] : memref<1x112xf32, #tpu.memory_space<vmem>>, vector<1x112xf32>
    %10 = vector.broadcast %9 : vector<1x112xf32> to vector<32x112xf32>
    %11 = arith.addf %8, %10 : vector<32x112xf32>
    %cst_13 = arith.constant 0.000000e+00 : f32
    %12 = vector.broadcast %cst_13 : f32 to vector<32x112xf32>
    %13 = arith.maximumf %11, %12 : vector<32x112xf32>
    %c0_14 = arith.constant 0 : index
    %c0_15 = arith.constant 0 : index
    %14 = vector.load %arg14[%c0_14, %c0_15] : memref<32x112xf32, #tpu.memory_space<vmem>>, vector<32x112xf32>
    tpu.vector_store %arg14[%c0_14, %c0_15], %13 {strides = array<i32>} : memref<32x112xf32, #tpu.memory_space<vmem>>, vector<32x112xf32>,
    %c0_16 = arith.constant 0 : index
    %c0_17 = arith.constant 0 : index
    %15 = vector.load %arg14[%c0_16, %c0_17] : memref<32x112xf32, #tpu.memory_space<vmem>>, vector<32x56xf32>
    %c0_18 = arith.constant 0 : index
    %c56 = arith.constant 56 : index
    %16 = vector.load %arg14[%c0_18, %c56] : memref<32x112xf32, #tpu.memory_space<vmem>>, vector<32x56xf32>
    %17 = arith.maximumf %15, %16 : vector<32x56xf32>
    %c0_19 = arith.constant 0 : index
    %c0_20 = arith.constant 0 : index
    %18 = vector.load %arg15[%c0_19, %c0_20] : memref<32x56xf32, #tpu.memory_space<vmem>>, vector<32x56xf32>
    tpu.vector_store %arg15[%c0_19, %c0_20], %17 {strides = array<i32>} : memref<32x56xf32, #tpu.memory_space<vmem>>, vector<32x56xf32>,
    %c0_21 = arith.constant 0 : index
    %c0_22 = arith.constant 0 : index
    %19 = tpu.strided_load %arg15[%c0_21, %c0_22] {strides = array<i32: 2, 1>} : memref<32x56xf32, #tpu.memory_space<vmem>>, vector<16x56xf32>
    %c1_23 = arith.constant 1 : index
    %c0_24 = arith.constant 0 : index
    %20 = tpu.strided_load %arg15[%c1_23, %c0_24] {strides = array<i32: 2, 1>} : memref<32x56xf32, #tpu.memory_space<vmem>>, vector<16x56xf32>
    %21 = arith.maximumf %19, %20 : vector<16x56xf32>
    %22 = arith.truncf %21 : vector<16x56xf32> to vector<16x56xbf16>
    %c0_25 = arith.constant 0 : index
    %c0_26 = arith.constant 0 : index
    %23 = vector.load %arg16[%c0_25, %c0_26] : memref<16x56xbf16, #tpu.memory_space<vmem>>, vector<16x56xbf16>
    tpu.vector_store %arg16[%c0_25, %c0_26], %22 {strides = array<i32>} : memref<16x56xbf16, #tpu.memory_space<vmem>>, vector<16x56xbf16>,
    %c0_27 = arith.constant 0 : index
    %c0_28 = arith.constant 0 : index
    %24 = vector.load %arg16[%c0_27, %c0_28] : memref<16x56xbf16, #tpu.memory_space<vmem>>, vector<16x56xbf16>
    %c0_29 = arith.constant 0 : index
    %c0_30 = arith.constant 0 : index
    %25 = vector.load %arg17[%c0_29, %c0_30] : memref<16x168xbf16, #tpu.memory_space<vmem>>, vector<16x56xbf16>
    tpu.vector_store %arg17[%c0_29, %c0_30], %24 {strides = array<i32>} : memref<16x168xbf16, #tpu.memory_space<vmem>>, vector<16x56xbf16>,
    %c1_31 = arith.constant 1 : index
    %c0_32 = arith.constant 0 : index
    %26 = vector.load %arg16[%c1_31, %c0_32] : memref<16x56xbf16, #tpu.memory_space<vmem>>, vector<15x56xbf16>
    %c0_33 = arith.constant 0 : index
    %c56_34 = arith.constant 56 : index
    %27 = vector.load %arg17[%c0_33, %c56_34] : memref<16x168xbf16, #tpu.memory_space<vmem>>, vector<15x56xbf16>
    tpu.vector_store %arg17[%c0_33, %c56_34], %26 {strides = array<i32>} : memref<16x168xbf16, #tpu.memory_space<vmem>>, vector<15x56xbf16>,
    %c2_35 = arith.constant 2 : index
    %c0_36 = arith.constant 0 : index
    %28 = vector.load %arg16[%c2_35, %c0_36] : memref<16x56xbf16, #tpu.memory_space<vmem>>, vector<14x56xbf16>
    %c0_37 = arith.constant 0 : index
    %c112 = arith.constant 112 : index
    %29 = vector.load %arg17[%c0_37, %c112] : memref<16x168xbf16, #tpu.memory_space<vmem>>, vector<14x56xbf16>
    tpu.vector_store %arg17[%c0_37, %c112], %28 {strides = array<i32>} : memref<16x168xbf16, #tpu.memory_space<vmem>>, vector<14x56xbf16>,
    %c0_38 = arith.constant 0 : index
    %c0_39 = arith.constant 0 : index
    %30 = vector.load %arg17[%c0_38, %c0_39] : memref<16x168xbf16, #tpu.memory_space<vmem>>, vector<16x168xbf16>
    %c0_40 = arith.constant 0 : index
    %c0_41 = arith.constant 0 : index
    %31 = vector.load %arg4[%c0_40, %c0_41] : memref<168x32xbf16, #tpu.memory_space<vmem>>, vector<168x32xbf16>
    %cst_42 = arith.constant dense<0.000000e+00> : vector<16x32xf32>
    %32 = tpu.matmul %30, %31, %cst_42 {dimension_numbers = #tpu.dot_dimension_numbers<[1], [0], [0], [1], [0, 0, 1, 1], [], []>} : vector<16x168xbf16>, vector<168x32xbf16>, vector<16x32xf32> -> vector<16x32xf32>
    %c0_43 = arith.constant 0 : index
    %c0_44 = arith.constant 0 : index
    %33 = vector.load %arg5[%c0_43, %c0_44] : memref<1x32xf32, #tpu.memory_space<vmem>>, vector<1x32xf32>
    %34 = vector.broadcast %33 : vector<1x32xf32> to vector<16x32xf32>
    %35 = arith.addf %32, %34 : vector<16x32xf32>
    %cst_45 = arith.constant 0.000000e+00 : f32
    %36 = vector.broadcast %cst_45 : f32 to vector<16x32xf32>
    %37 = arith.maximumf %35, %36 : vector<16x32xf32>
    %c0_46 = arith.constant 0 : index
    %c0_47 = arith.constant 0 : index
    %38 = vector.load %arg18[%c0_46, %c0_47] : memref<16x32xf32, #tpu.memory_space<vmem>>, vector<16x32xf32>
    tpu.vector_store %arg18[%c0_46, %c0_47], %37 {strides = array<i32>} : memref<16x32xf32, #tpu.memory_space<vmem>>, vector<16x32xf32>,
    %c0_48 = arith.constant 0 : index
    %c0_49 = arith.constant 0 : index
    %39 = vector.load %arg18[%c0_48, %c0_49] : memref<16x32xf32, #tpu.memory_space<vmem>>, vector<16x16xf32>
    %c0_50 = arith.constant 0 : index
    %c16 = arith.constant 16 : index
    %40 = vector.load %arg18[%c0_50, %c16] : memref<16x32xf32, #tpu.memory_space<vmem>>, vector<16x16xf32>
    %41 = arith.maximumf %39, %40 : vector<16x16xf32>
    %c0_51 = arith.constant 0 : index
    %c0_52 = arith.constant 0 : index
    %42 = vector.load %arg19[%c0_51, %c0_52] : memref<16x16xf32, #tpu.memory_space<vmem>>, vector<16x16xf32>
    tpu.vector_store %arg19[%c0_51, %c0_52], %41 {strides = array<i32>} : memref<16x16xf32, #tpu.memory_space<vmem>>, vector<16x16xf32>,
    %c0_53 = arith.constant 0 : index
    %c0_54 = arith.constant 0 : index
    %43 = tpu.strided_load %arg19[%c0_53, %c0_54] {strides = array<i32: 2, 1>} : memref<16x16xf32, #tpu.memory_space<vmem>>, vector<8x16xf32>
    %c1_55 = arith.constant 1 : index
    %c0_56 = arith.constant 0 : index
    %44 = tpu.strided_load %arg19[%c1_55, %c0_56] {strides = array<i32: 2, 1>} : memref<16x16xf32, #tpu.memory_space<vmem>>, vector<8x16xf32>
    %45 = arith.maximumf %43, %44 : vector<8x16xf32>
    %c0_57 = arith.constant 0 : index
    %c0_58 = arith.constant 0 : index
    %46 = vector.load %arg20[%c0_57, %c0_58] : memref<8x16xf32, #tpu.memory_space<vmem>>, vector<8x16xf32>
    tpu.vector_store %arg20[%c0_57, %c0_58], %45 {strides = array<i32>} : memref<8x16xf32, #tpu.memory_space<vmem>>, vector<8x16xf32>,
    %c0_59 = arith.constant 0 : index
    %c0_60 = arith.constant 0 : index
    %47 = tpu.strided_load %arg20[%c0_59, %c0_60] {strides = array<i32: 4, 1>} : memref<8x16xf32, #tpu.memory_space<vmem>>, vector<2x16xf32>
    %c0_61 = arith.constant 0 : index
    %c0_62 = arith.constant 0 : index
    %c0_63 = arith.constant 0 : index
    %48 = vector.load %arg6[%c0_61, %c0_62, %c0_63] : memref<2x16x32xf32, #tpu.memory_space<vmem>>, vector<1x16x32xf32>
    %49 = vector.shape_cast %48 : vector<1x16x32xf32> to vector<16x32xf32>
    %cst_64 = arith.constant dense<0.000000e+00> : vector<2x32xf32>
    %50 = tpu.matmul %47, %49, %cst_64 {dimension_numbers = #tpu.dot_dimension_numbers<[1], [0], [0], [1], [0, 0, 1, 1], [], []>} : vector<2x16xf32>, vector<16x32xf32>, vector<2x32xf32> -> vector<2x32xf32>
    %c0_65 = arith.constant 0 : index
    %c0_66 = arith.constant 0 : index
    %51 = vector.load %arg7[%c0_65, %c0_66] : memref<1x32xf32, #tpu.memory_space<vmem>>, vector<1x32xf32>
    %52 = vector.broadcast %51 : vector<1x32xf32> to vector<2x32xf32>
    %53 = arith.addf %50, %52 : vector<2x32xf32>
    %c1_67 = arith.constant 1 : index
    %c0_68 = arith.constant 0 : index
    %54 = tpu.strided_load %arg20[%c1_67, %c0_68] {strides = array<i32: 4, 1>} : memref<8x16xf32, #tpu.memory_space<vmem>>, vector<2x16xf32>
    %c1_69 = arith.constant 1 : index
    %c0_70 = arith.constant 0 : index
    %c0_71 = arith.constant 0 : index
    %55 = vector.load %arg6[%c1_69, %c0_70, %c0_71] : memref<2x16x32xf32, #tpu.memory_space<vmem>>, vector<1x16x32xf32>
    %56 = vector.shape_cast %55 : vector<1x16x32xf32> to vector<16x32xf32>
    %cst_72 = arith.constant dense<0.000000e+00> : vector<2x32xf32>
    %57 = tpu.matmul %54, %56, %cst_72 {dimension_numbers = #tpu.dot_dimension_numbers<[1], [0], [0], [1], [0, 0, 1, 1], [], []>} : vector<2x16xf32>, vector<16x32xf32>, vector<2x32xf32> -> vector<2x32xf32>
    %58 = arith.addf %53, %57 : vector<2x32xf32>
    %cst_73 = arith.constant 0.000000e+00 : f32
    %59 = vector.broadcast %cst_73 : f32 to vector<2x32xf32>
    %60 = arith.maximumf %58, %59 : vector<2x32xf32>
    %c0_74 = arith.constant 0 : index
    %c0_75 = arith.constant 0 : index
    %61 = vector.load %arg8[%c0_74, %c0_75] : memref<32x16xf32, #tpu.memory_space<vmem>>, vector<32x16xf32>
    %cst_76 = arith.constant dense<0.000000e+00> : vector<2x16xf32>
    %62 = tpu.matmul %60, %61, %cst_76 {dimension_numbers = #tpu.dot_dimension_numbers<[1], [0], [0], [1], [0, 0, 1, 1], [], []>} : vector<2x32xf32>, vector<32x16xf32>, vector<2x16xf32> -> vector<2x16xf32>
    %c0_77 = arith.constant 0 : index
    %c0_78 = arith.constant 0 : index
    %63 = vector.load %arg9[%c0_77, %c0_78] : memref<1x16xf32, #tpu.memory_space<vmem>>, vector<1x16xf32>
    %64 = vector.broadcast %63 : vector<1x16xf32> to vector<2x16xf32>
    %65 = arith.addf %62, %64 : vector<2x16xf32>
    %cst_79 = arith.constant 0.000000e+00 : f32
    %66 = vector.broadcast %cst_79 : f32 to vector<2x16xf32>
    %67 = arith.maximumf %65, %66 : vector<2x16xf32>
    %c0_80 = arith.constant 0 : index
    %c0_81 = arith.constant 0 : index
    %68 = vector.load %arg10[%c0_80, %c0_81] : memref<16x10xf32, #tpu.memory_space<vmem>>, vector<16x10xf32>
    %cst_82 = arith.constant dense<0.000000e+00> : vector<2x10xf32>
    %69 = tpu.matmul %67, %68, %cst_82 {dimension_numbers = #tpu.dot_dimension_numbers<[1], [0], [0], [1], [0, 0, 1, 1], [], []>} : vector<2x16xf32>, vector<16x10xf32>, vector<2x10xf32> -> vector<2x10xf32>
    %c0_83 = arith.constant 0 : index
    %c0_84 = arith.constant 0 : index
    %70 = vector.load %arg11[%c0_83, %c0_84] : memref<1x10xf32, #tpu.memory_space<vmem>>, vector<1x10xf32>
    %71 = vector.broadcast %70 : vector<1x10xf32> to vector<2x10xf32>
    %72 = arith.addf %69, %71 : vector<2x10xf32>
    %c0_85 = arith.constant 0 : index
    %c0_86 = arith.constant 0 : index
    %73 = vector.load %arg12[%c0_85, %c0_86] : memref<2x10xf32, #tpu.memory_space<vmem>>, vector<2x10xf32>
    tpu.vector_store %arg12[%c0_85, %c0_86], %72 {strides = array<i32>} : memref<2x10xf32, #tpu.memory_space<vmem>>, vector<2x10xf32>,
    return
  }
  func.func @transform_0(%arg0: i32) -> (i32, i32) {
    %c0_i32 = arith.constant 0 : i32
    %c0_i32_0 = arith.constant 0 : i32
    return %arg0, %c0_i32 : i32, i32
  }
  func.func @transform_1(%arg0: i32) -> (i32, i32) {
    %c0_i32 = arith.constant 0 : i32
    %c0_i32_0 = arith.constant 0 : i32
    %c0_i32_1 = arith.constant 0 : i32
    return %c0_i32, %c0_i32_0 : i32, i32
  }
  func.func @transform_2(%arg0: i32) -> (i32, i32) {
    %c0_i32 = arith.constant 0 : i32
    %c0_i32_0 = arith.constant 0 : i32
    %c0_i32_1 = arith.constant 0 : i32
    return %c0_i32, %c0_i32_0 : i32, i32
  }
  func.func @transform_3(%arg0: i32) -> (i32, i32) {
    %c0_i32 = arith.constant 0 : i32
    %c0_i32_0 = arith.constant 0 : i32
    %c0_i32_1 = arith.constant 0 : i32
    return %c0_i32, %c0_i32_0 : i32, i32
  }
  func.func @transform_4(%arg0: i32) -> (i32, i32) {
    %c0_i32 = arith.constant 0 : i32
    %c0_i32_0 = arith.constant 0 : i32
    %c0_i32_1 = arith.constant 0 : i32
    return %c0_i32, %c0_i32_0 : i32, i32
  }
  func.func @transform_5(%arg0: i32) -> (i32, i32, i32) {
    %c0_i32 = arith.constant 0 : i32
    %c0_i32_0 = arith.constant 0 : i32
    %c0_i32_1 = arith.constant 0 : i32
    %c0_i32_2 = arith.constant 0 : i32
    return %c0_i32, %c0_i32_0, %c0_i32_1 : i32, i32, i32
  }
  func.func @transform_6(%arg0: i32) -> (i32, i32) {
    %c0_i32 = arith.constant 0 : i32
    %c0_i32_0 = arith.constant 0 : i32
    %c0_i32_1 = arith.constant 0 : i32
    return %c0_i32, %c0_i32_0 : i32, i32
  }
  func.func @transform_7(%arg0: i32) -> (i32, i32) {
    %c0_i32 = arith.constant 0 : i32
    %c0_i32_0 = arith.constant 0 : i32
    %c0_i32_1 = arith.constant 0 : i32
    return %c0_i32, %c0_i32_0 : i32, i32
  }
  func.func @transform_8(%arg0: i32) -> (i32, i32) {
    %c0_i32 = arith.constant 0 : i32
    %c0_i32_0 = arith.constant 0 : i32
    %c0_i32_1 = arith.constant 0 : i32
    return %c0_i32, %c0_i32_0 : i32, i32
  }
  func.func @transform_9(%arg0: i32) -> (i32, i32) {
    %c0_i32 = arith.constant 0 : i32
    %c0_i32_0 = arith.constant 0 : i32
    %c0_i32_1 = arith.constant 0 : i32
    return %c0_i32, %c0_i32_0 : i32, i32
  }
  func.func @transform_10(%arg0: i32) -> (i32, i32) {
    %c0_i32 = arith.constant 0 : i32
    %c0_i32_0 = arith.constant 0 : i32
    %c0_i32_1 = arith.constant 0 : i32
    return %c0_i32, %c0_i32_0 : i32, i32
  }
  func.func @transform_11(%arg0: i32) -> (i32, i32) {
    %c0_i32 = arith.constant 0 : i32
    %c0_i32_0 = arith.constant 0 : i32
    return %arg0, %c0_i32 : i32, i32
  }
}

</mosaic_0001>

<llo_original>
// kernel: simple_cnn_forward.1
$region0: #{simple_cnn_forward.1}
  #allocation0 [shape = 'u32[]', space=smem, size = 0x4, offset = 0x4, fixed_abs, tag = 'smem constant byte address 0x4 - core index']
  #allocation1 [shape = 'u32[72,128]{1,0:T(1,128)}', space=vmem, size = 0x9000, scoped, tag = 'internal scratch']
  #allocation2 [shape = 'bf16[32,192]{1,0:T(8,128)(2,1)}', space=vmem, size = 0x4000, scoped, tag = 'scratch operand']
  #allocation3 [shape = 'f32[32,112]{1,0:T(8,128)}', space=vmem, size = 0x4000, scoped, tag = 'scratch operand']
  #allocation4 [shape = 'f32[32,56]{1,0:T(8,128)}', space=vmem, size = 0x4000, scoped, tag = 'scratch operand']
  #allocation5 [shape = 'bf16[16,56]{1,0:T(8,128)(2,1)}', space=vmem, size = 0x1000, scoped, tag = 'scratch operand']
  #allocation6 [shape = 'bf16[16,168]{1,0:T(8,128)(2,1)}', space=vmem, size = 0x2000, scoped, tag = 'scratch operand']
  #allocation7 [shape = 'f32[16,32]{1,0:T(8,128)}', space=vmem, size = 0x2000, scoped, tag = 'scratch operand']
  #allocation8 [shape = 'f32[16,16]{1,0:T(8,128)}', space=vmem, size = 0x2000, scoped, tag = 'scratch operand']
  #allocation9 [shape = 'f32[8,16]{1,0:T(8,128)}', space=vmem, size = 0x1000, scoped, tag = 'scratch operand']
  %s0 = inlined_call_operand.vmem [shape: bf16[32,64], index: 0, kind: input, shape index: {}]
  %s1 = inlined_call_operand.vmem [shape: bf16[192,112], index: 1, kind: input, shape index: {}]
  %s2 = inlined_call_operand.vmem [shape: f32[1,112], index: 2, kind: input, shape index: {}]
  %s3 = inlined_call_operand.vmem [shape: bf16[168,32], index: 3, kind: input, shape index: {}]
  %s4 = inlined_call_operand.vmem [shape: f32[1,32], index: 4, kind: input, shape index: {}]
  %s5 = inlined_call_operand.vmem [shape: f32[2,16,32], index: 5, kind: input, shape index: {}]
  %s6 = inlined_call_operand.vmem [shape: f32[1,32], index: 6, kind: input, shape index: {}]
  %s7 = inlined_call_operand.vmem [shape: f32[32,16], index: 7, kind: input, shape index: {}]
  %s8 = inlined_call_operand.vmem [shape: f32[1,16], index: 8, kind: input, shape index: {}]
  %s9 = inlined_call_operand.vmem [shape: f32[16,10], index: 9, kind: input, shape index: {}]
  %s10 = inlined_call_operand.vmem [shape: f32[1,10], index: 10, kind: input, shape index: {}]
  %s11 = inlined_call_operand.hbm [shape: f32[2,10], index: 11, kind: output, shape index: {}]
  %s12 = sld [smem:[#allocation0]]
  $region54: #{simple_cnn_forward.1} parent=0
    _
  %s14 = ssub.s32 1, %s12
  %s15 = scalar_select 0, %s14, %s12
  $region1: #{simple_cnn_forward.1} parent=0
    #allocation10 [shape = 'u8[1024]{0}', space=vmem, size = 0x400, scoped, tag = 'output window, operand 0, single buffered']
    #allocation11 [shape = 's32[1]{0}', space=sflag, size = 0x4, scoped, tag = 'scoped memory for simple_cnn_forward.1']
    %16 = vsyncpa [#allocation11], 0
    // Predicated region
    $region2: #{simple_cnn_forward.1} parent=1 // pred_check
      _
    $region3: #{simple_cnn_forward.1} parent=1 // pred_check_branch
      %18 = sbr.rel (0) target = $region5
    $region4: #{simple_cnn_forward.1} parent=1 // pred_region
      _
    $region5: #{simple_cnn_forward.1} parent=1 // pred_fallthru
      _
    // Predicated region
    $region6: #{simple_cnn_forward.1} parent=1 // pred_check
      _
    $region7: #{simple_cnn_forward.1} parent=1 // pred_check_branch
      %20 = sbr.rel (0) target = $region9
    $region8: #{simple_cnn_forward.1} parent=1 // pred_region
      _
    $region9: #{simple_cnn_forward.1} parent=1 // pred_fallthru
      _
    // Predicated region
    $region10: #{simple_cnn_forward.1} parent=1 // pred_check
      _
    $region11: #{simple_cnn_forward.1} parent=1 // pred_check_branch
      %22 = sbr.rel (0) target = $region13
    $region12: #{simple_cnn_forward.1} parent=1 // pred_region
      _
    $region13: #{simple_cnn_forward.1} parent=1 // pred_fallthru
      _
    // Predicated region
    $region14: #{simple_cnn_forward.1} parent=1 // pred_check
      _
    $region15: #{simple_cnn_forward.1} parent=1 // pred_check_branch
      %24 = sbr.rel (0) target = $region17
    $region16: #{simple_cnn_forward.1} parent=1 // pred_region
      _
    $region17: #{simple_cnn_forward.1} parent=1 // pred_fallthru
      _
    // Predicated region
    $region18: #{simple_cnn_forward.1} parent=1 // pred_check
      _
    $region19: #{simple_cnn_forward.1} parent=1 // pred_check_branch
      %26 = sbr.rel (0) target = $region21
    $region20: #{simple_cnn_forward.1} parent=1 // pred_region
      _
    $region21: #{simple_cnn_forward.1} parent=1 // pred_fallthru
      _
    // Predicated region
    $region22: #{simple_cnn_forward.1} parent=1 // pred_check
      _
    $region23: #{simple_cnn_forward.1} parent=1 // pred_check_branch
      %28 = sbr.rel (0) target = $region25
    $region24: #{simple_cnn_forward.1} parent=1 // pred_region
      _
    $region25: #{simple_cnn_forward.1} parent=1 // pred_fallthru
      _
    // Predicated region
    $region26: #{simple_cnn_forward.1} parent=1 // pred_check
      _
    $region27: #{simple_cnn_forward.1} parent=1 // pred_check_branch
      %30 = sbr.rel (0) target = $region29
    $region28: #{simple_cnn_forward.1} parent=1 // pred_region
      _
    $region29: #{simple_cnn_forward.1} parent=1 // pred_fallthru
      _
    // Predicated region
    $region30: #{simple_cnn_forward.1} parent=1 // pred_check
      _
    $region31: #{simple_cnn_forward.1} parent=1 // pred_check_branch
      %32 = sbr.rel (0) target = $region33
    $region32: #{simple_cnn_forward.1} parent=1 // pred_region
      _
    $region33: #{simple_cnn_forward.1} parent=1 // pred_fallthru
      _
    // Predicated region
    $region34: #{simple_cnn_forward.1} parent=1 // pred_check
      _
    $region35: #{simple_cnn_forward.1} parent=1 // pred_check_branch
      %34 = sbr.rel (0) target = $region37
    $region36: #{simple_cnn_forward.1} parent=1 // pred_region
      _
    $region37: #{simple_cnn_forward.1} parent=1 // pred_fallthru
      _
    // Predicated region
    $region38: #{simple_cnn_forward.1} parent=1 // pred_check
      _
    $region39: #{simple_cnn_forward.1} parent=1 // pred_check_branch
      %36 = sbr.rel (0) target = $region41
    $region40: #{simple_cnn_forward.1} parent=1 // pred_region
      _
    $region41: #{simple_cnn_forward.1} parent=1 // pred_fallthru
      _
    // Predicated region
    $region42: #{simple_cnn_forward.1} parent=1 // pred_check
      _
    $region43: #{simple_cnn_forward.1} parent=1 // pred_check_branch
      %38 = sbr.rel (0) target = $region45
    $region44: #{simple_cnn_forward.1} parent=1 // pred_region
      _
    $region45: #{simple_cnn_forward.1} parent=1 // pred_fallthru
      _
    %v40 = vld [vmem:[%s0] sm:$0xf]
    %v41 = vld [vmem:[%s0 + $0x4] sm:$0xf]
    %v42 = vld [vmem:[%s0 + $0x8] sm:$0xf]
    %v43 = vld [vmem:[%s0 + $0xc] sm:$0xf]
    %vm44 = vcmask 519168
    %45 = vst.msk [vmem:[#allocation2] sm:$0xf] %vm44, %v40
    %46 = vst.msk [vmem:[#allocation2 + $0x8] sm:$0xf] %vm44, %v41
    %47 = vst.msk [vmem:[#allocation2 + $0x10] sm:$0xf] %vm44, %v42
    %48 = vst.msk [vmem:[#allocation2 + $0x18] sm:$0xf] %vm44, %v43
    %v49 = vld [vmem:[%s0] sm:$0xf]
    %v50 = vld [vmem:[%s0 + $0x4] sm:$0xf]
    %v51 = vld [vmem:[%s0 + $0x8] sm:$0xf]
    %v52 = vld [vmem:[%s0 + $0xc] sm:$0xf]
    %vm53 = vsmask.f32 3328
    %vm54 = vsmask.f32 7440
    %vm55 = vmor %vm53, %vm54
    %v57 = vshrl.u32 %v49, 16
    %v59 = vrot.slane %v57, 4
    %v60 = vshll.u32 %v49, 16
    %v62 = vrot.slane %v60, 5
    %v63 = vor.u32 %v59, %v62
    %v64 = vrot.slane %v63, 4
    %v66 = vshll.u32 %v50, 16
    %v68 = vrot.slane %v66, 5
    %v69 = vsel %vm55, %v64, %v68
    %v70 = vshrl.u32 %v50, 16
    %v72 = vrot.slane %v70, 4
    %v73 = vor.u32 %v72, %v68
    %v74 = vrot.slane %v73, 4
    %v76 = vshll.u32 %v51, 16
    %v78 = vrot.slane %v76, 5
    %v79 = vsel %vm55, %v74, %v78
    %v80 = vshrl.u32 %v51, 16
    %v82 = vrot.slane %v80, 4
    %v83 = vor.u32 %v82, %v78
    %v84 = vrot.slane %v83, 4
    %v86 = vshll.u32 %v52, 16
    %v88 = vrot.slane %v86, 5
    %v89 = vsel %vm55, %v84, %v88
    %v90 = vshrl.u32 %v52, 16
    %v92 = vrot.slane %v90, 4
    %v93 = vor.u32 %v92, %v88
    %v94 = vrot.slane %v93, 4
    %95 = vrot.lane.b32.xlu0 %v69, 64
    %v96 = vpop.permute.xlu0 %95
    %97 = vrot.lane.b32.xlu0 %v79, 64
    %v98 = vpop.permute.xlu0 %97
    %99 = vrot.lane.b32.xlu0 %v89, 64
    %v100 = vpop.permute.xlu0 %99
    %101 = vrot.lane.b32.xlu0 %v94, 64
    %v102 = vpop.permute.xlu0 %101
    %vm107 = vcmask 1043968
    %108 = vst.msk [vmem:[#allocation2] sm:$0xf] %vm107, %v96
    %109 = vst.msk [vmem:[#allocation2 + $0x8] sm:$0xf] %vm107, %v98
    %110 = vst.msk [vmem:[#allocation2 + $0x10] sm:$0xf] %vm107, %v100
    %vm111 = vcmask 1043968
    %vm112 = vmand %vm111, %vm53
    %v113 = vld [vmem:[#allocation2 + $0x18] sm:$0xf]
    %v114 = vsel %vm112, %v102, %v113
    %115 = vst [vmem:[#allocation2 + $0x18] sm:$0xf] %v114
    %v116 = vld [vmem:[%s0] sm:$0xe]
    %v117 = vld [vmem:[%s0 + $0x4] sm:$0xf]
    %v118 = vld [vmem:[%s0 + $0x8] sm:$0xf]
    %v119 = vld [vmem:[%s0 + $0xc] sm:$0xf]
    %vm124 = vcmask 1042432
    %vm125 = vcmask 1046532
    %vm126 = vmor %vm124, %vm125
    %v127 = vrot.slane %v116, 5
    %v128 = vrot.slane %v127, 4
    %v129 = vrot.slane %v117, 5
    %v130 = vsel %vm126, %v128, %v129
    %v131 = vrot.slane %v129, 4
    %v132 = vrot.slane %v118, 5
    %v133 = vsel %vm126, %v131, %v132
    %v134 = vrot.slane %v132, 4
    %v135 = vrot.slane %v119, 5
    %v136 = vsel %vm126, %v134, %v135
    %v137 = vrot.slane %v135, 4
    %142 = vst.msk [vmem:[#allocation2 + $0x4] sm:$0xf] %vm44, %v130
    %143 = vst.msk [vmem:[#allocation2 + $0xc] sm:$0xf] %vm44, %v133
    %144 = vst.msk [vmem:[#allocation2 + $0x14] sm:$0xf] %vm44, %v136
    %vm145 = vcmask 518144
    %146 = vst.msk [vmem:[#allocation2 + $0x1c] sm:$0x7] %vm145, %v137
    %v147 = vld [vmem:[#allocation2] sm:$0xff]
    %v148 = vld [vmem:[#allocation2 + $0x8] sm:$0xff]
    %v149 = vld [vmem:[#allocation2 + $0x10] sm:$0xff]
    %v150 = vld [vmem:[#allocation2 + $0x18] sm:$0xff]
    %v151 = vld [vmem:[%s1] sm:$0xf]
    %v152 = vld [vmem:[%s1 + $0x4] sm:$0xf]
    %v153 = vld [vmem:[%s1 + $0x8] sm:$0xf]
    %v154 = vld [vmem:[%s1 + $0xc] sm:$0xf]
    %v155 = vld [vmem:[%s1 + $0x10] sm:$0xf]
    %v156 = vld [vmem:[%s1 + $0x14] sm:$0xf]
    %v157 = vld [vmem:[%s1 + $0x18] sm:$0xf]
    %v158 = vld [vmem:[%s1 + $0x1c] sm:$0xf]
    %v159 = vld [vmem:[%s1 + $0x20] sm:$0xf]
    %v160 = vld [vmem:[%s1 + $0x24] sm:$0xf]
    %v161 = vld [vmem:[%s1 + $0x28] sm:$0xf]
    %v162 = vld [vmem:[%s1 + $0x2c] sm:$0xf]
    %v163 = vld [vmem:[%s1 + $0x30] sm:$0xf]
    %v164 = vld [vmem:[%s1 + $0x34] sm:$0xf]
    %v165 = vld [vmem:[%s1 + $0x38] sm:$0xf]
    %v166 = vld [vmem:[%s1 + $0x3c] sm:$0xf]
    %v167 = vld [vmem:[%s1 + $0x40] sm:$0xf]
    %v168 = vld [vmem:[%s1 + $0x44] sm:$0xf]
    %v169 = vld [vmem:[%s1 + $0x48] sm:$0xf]
    %v170 = vld [vmem:[%s1 + $0x4c] sm:$0xf]
    %v171 = vld [vmem:[%s1 + $0x50] sm:$0xf]
    %v172 = vld [vmem:[%s1 + $0x54] sm:$0xf]
    %v173 = vld [vmem:[%s1 + $0x58] sm:$0xf]
    %v174 = vld [vmem:[%s1 + $0x5c] sm:$0xf]
    %v175 = vld [vmem:[%s2] sm:$0x1]
    %v177 = vperm.slane %v175, 0
    %v183 = vunpack.c.l.b16 %v147
    %v184 = vunpack.c.h.b16 %v147
    %v185 = vunpack.c.l.b16 %v148
    %v186 = vunpack.c.h.b16 %v148
    %v187 = vunpack.c.l.b16 %v149
    %v188 = vunpack.c.h.b16 %v149
    %v189 = vunpack.c.l.b16 %v150
    %v190 = vunpack.c.h.b16 %v150
    %v191 = vpack.c.b16 %v185, %v183
    %v192 = vpack.c.b16 %v186, %v184
    %v193 = vpack.c.b16 %v189, %v187
    %v194 = vpack.c.b16 %v190, %v188
    %v221 = vunpack.c.l.b16 %v151
    %v222 = vunpack.c.l.b16 %v152
    %v223 = vunpack.c.l.b16 %v153
    %v224 = vunpack.c.l.b16 %v154
    %v225 = vunpack.c.l.b16 %v155
    %v226 = vunpack.c.l.b16 %v156
    %v227 = vunpack.c.l.b16 %v157
    %v228 = vunpack.c.l.b16 %v158
    %v229 = vunpack.c.l.b16 %v159
    %v230 = vunpack.c.l.b16 %v160
    %v231 = vunpack.c.l.b16 %v161
    %v232 = vunpack.c.l.b16 %v162
    %v233 = vunpack.c.l.b16 %v163
    %v234 = vunpack.c.l.b16 %v164
    %v235 = vunpack.c.l.b16 %v165
    %v236 = vunpack.c.l.b16 %v166
    %v237 = vunpack.c.l.b16 %v167
    %v238 = vunpack.c.l.b16 %v168
    %v239 = vunpack.c.l.b16 %v169
    %v240 = vunpack.c.l.b16 %v170
    %v241 = vunpack.c.l.b16 %v171
    %v242 = vunpack.c.l.b16 %v172
    %v243 = vunpack.c.l.b16 %v173
    %v244 = vunpack.c.l.b16 %v174
    %v245 = vpack.c.b16 %v222, %v221
    %v246 = vpack.c.b16 %v224, %v223
    %v247 = vpack.c.b16 %v226, %v225
    %v248 = vpack.c.b16 %v228, %v227
    %v249 = vpack.c.b16 %v230, %v229
    %v250 = vpack.c.b16 %v232, %v231
    %v251 = vpack.c.b16 %v234, %v233
    %v252 = vpack.c.b16 %v236, %v235
    %v253 = vpack.c.b16 %v238, %v237
    %v254 = vpack.c.b16 %v240, %v239
    %v255 = vpack.c.b16 %v242, %v241
    %v256 = vpack.c.b16 %v244, %v243
    %vm269 = vcmask 523264
    %v271 = vsel %vm269, %v192, 0
    %v274 = vsel %vm269, %v194, 0
    %276 = vmatpush.bf16.msra.mxu0 %v252
    %277 = vmatpush.bf16.msra.mxu0 %v251
    %278 = vmatpush.bf16.msra.mxu0 %v250
    %279 = vmatpush.bf16.msra.mxu0 %v249
    %280 = vmatpush.bf16.msra.mxu0 %v248
    %281 = vmatpush.bf16.msra.mxu0 %v247
    %282 = vmatpush.bf16.msra.mxu0 %v246
    %283 = vmatpush.bf16.msra.mxu0 %v245
    %284 = vmatmul.bf16.gmra.mxu0 %v191
    %v285 = vpop.f32.mrf.mxu0
    %v286 = vadd.f32 %v177, %v285
    %v287 = vpop.f32.mrf.mxu0
    %v288 = vadd.f32 %v177, %v287
    %289 = vmatmul.bf16.gmra.mxu0 %v193
    %v290 = vpop.f32.mrf.mxu0
    %v291 = vadd.f32 %v177, %v290
    %v292 = vpop.f32.mrf.mxu0
    %v293 = vadd.f32 %v177, %v292
    %294 = vdwg.mxu0
    %295 = vmatpush.bf16.msra.mxu0 0
    %296 = vmatpush.bf16.msra.mxu0 0
    %297 = vmatpush.bf16.msra.mxu0 0
    %298 = vmatpush.bf16.msra.mxu0 0
    %299 = vmatpush.bf16.msra.mxu0 %v256
    %300 = vmatpush.bf16.msra.mxu0 %v255
    %301 = vmatpush.bf16.msra.mxu0 %v254
    %302 = vmatpush.bf16.msra.mxu0 %v253
    %303 = vmatmul.bf16.gmra.mxu0 %v271
    %v304 = vpop.f32.mrf.mxu0
    %v305 = vadd.f32 %v286, %v304
    %v306 = vpop.f32.mrf.mxu0
    %v307 = vadd.f32 %v288, %v306
    %308 = vmatmul.bf16.gmra.mxu0 %v274
    %v309 = vpop.f32.mrf.mxu0
    %v310 = vadd.f32 %v291, %v309
    %v311 = vpop.f32.mrf.mxu0
    %v312 = vadd.f32 %v293, %v311
    %313 = vdwg.mxu0
    %v314 = vmax.f32 %v305, 0.0
    %v315 = vmax.f32 %v307, 0.0
    %v316 = vmax.f32 %v310, 0.0
    %v317 = vmax.f32 %v312, 0.0
    %vm318 = vcmask 916480
    %319 = vst.msk [vmem:[#allocation3] sm:$0xff] %vm318, %v314
    %320 = vst.msk [vmem:[#allocation3 + $0x8] sm:$0xff] %vm318, %v315
    %321 = vst.msk [vmem:[#allocation3 + $0x10] sm:$0xff] %vm318, %v316
    %322 = vst.msk [vmem:[#allocation3 + $0x18] sm:$0xff] %vm318, %v317
    %v323 = vld [vmem:[#allocation3] sm:$0xff]
    %v324 = vld [vmem:[#allocation3 + $0x8] sm:$0xff]
    %v325 = vld [vmem:[#allocation3 + $0x10] sm:$0xff]
    %v326 = vld [vmem:[#allocation3 + $0x18] sm:$0xff]
    %331 = vrot.lane.b32.xlu0 %v323, 72
    %v332 = vpop.permute.xlu0 %331
    %333 = vrot.lane.b32.xlu0 %v324, 72
    %v334 = vpop.permute.xlu0 %333
    %335 = vrot.lane.b32.xlu0 %v325, 72
    %v336 = vpop.permute.xlu0 %335
    %337 = vrot.lane.b32.xlu0 %v326, 72
    %v338 = vpop.permute.xlu0 %337
    %v343 = vmax.f32 %v323, %v332
    %v344 = vmax.f32 %v324, %v334
    %v345 = vmax.f32 %v325, %v336
    %v346 = vmax.f32 %v326, %v338
    %vm347 = vcmask 457728
    %348 = vst.msk [vmem:[#allocation4] sm:$0xff] %vm347, %v343
    %349 = vst.msk [vmem:[#allocation4 + $0x8] sm:$0xff] %vm347, %v344
    %350 = vst.msk [vmem:[#allocation4 + $0x10] sm:$0xff] %vm347, %v345
    %351 = vst.msk [vmem:[#allocation4 + $0x18] sm:$0xff] %vm347, %v346
    %v352 = vld [vmem:[#allocation4] ss:$2 sm:$0xff]
    %s353 = scalar_lea.vmem [#allocation4], 16
    %v354 = vld [vmem:[%s353] ss:$2 sm:$0xff]
    %s355 = scalar_lea.vmem [#allocation4], 1
    %v356 = vld [vmem:[%s355] ss:$2 sm:$0xff]
    %s357 = scalar_lea.vmem [#allocation4], 17
    %v358 = vld [vmem:[%s357] ss:$2 sm:$0xff]
    %v359 = vmax.f32 %v352, %v356
    %v360 = vmax.f32 %v354, %v358
    %v361 = vpack.c.bf16 %v359, %v359
    %v362 = vpack.c.bf16 %v360, %v360
    %vm363 = vcmask 453632
    %364 = vst.msk [vmem:[#allocation5] sm:$0xf] %vm363, %v361
    %365 = vst.msk [vmem:[#allocation5 + $0x4] sm:$0xf] %vm363, %v362
    %v366 = vld [vmem:[#allocation5] sm:$0xf]
    %v367 = vld [vmem:[#allocation5 + $0x4] sm:$0xf]
    %368 = vst.msk [vmem:[#allocation6] sm:$0xf] %vm363, %v366
    %369 = vst.msk [vmem:[#allocation6 + $0x8] sm:$0xf] %vm363, %v367
    %v370 = vld [vmem:[#allocation5] sm:$0xf]
    %v371 = vld [vmem:[#allocation5 + $0x4] sm:$0xf]
    %v373 = vshrl.u32 %v370, 16
    %v375 = vrot.slane %v373, 4
    %v376 = vshll.u32 %v370, 16
    %v378 = vrot.slane %v376, 5
    %v379 = vor.u32 %v375, %v378
    %v380 = vrot.slane %v379, 4
    %v382 = vshll.u32 %v371, 16
    %v384 = vrot.slane %v382, 5
    %v385 = vsel %vm55, %v380, %v384
    %v386 = vshrl.u32 %v371, 16
    %v388 = vrot.slane %v386, 4
    %v389 = vor.u32 %v388, %v384
    %v390 = vrot.slane %v389, 4
    %391 = vrot.lane.b32.xlu0 %v385, 56
    %v392 = vpop.permute.xlu0 %391
    %393 = vrot.lane.b32.xlu0 %v390, 56
    %v394 = vpop.permute.xlu0 %393
    %vm397 = vcmask 912832
    %398 = vst.msk [vmem:[#allocation6] sm:$0xf] %vm397, %v392
    %vm399 = vcmask 912832
    %vm400 = vmand %vm399, %vm53
    %v401 = vld [vmem:[#allocation6 + $0x8] sm:$0xf]
    %v402 = vsel %vm400, %v394, %v401
    %403 = vst [vmem:[#allocation6 + $0x8] sm:$0xf] %v402
    %v404 = vld [vmem:[#allocation5] sm:$0xe]
    %v405 = vld [vmem:[#allocation5 + $0x4] sm:$0xf]
    %v408 = vrot.slane %v404, 5
    %v409 = vrot.slane %v408, 4
    %v410 = vrot.slane %v405, 5
    %v411 = vsel %vm126, %v409, %v410
    %v412 = vrot.slane %v410, 4
    %413 = vrot.lane.b32.xlu0 %v411, 112
    %v414 = vpop.permute.xlu0 %413
    %415 = vrot.lane.b32.xlu0 %v412, 112
    %v416 = vpop.permute.xlu0 %415
    %v417 = vrot.slane %v414, 4
    %v418 = vrot.slane %v416, 4
    %vm419 = vcmask 916480
    %v420 = vsel %vm419, %v417, %v414
    %v421 = vsel %vm419, %v418, %v416
    %vm424 = vcmask 1044352
    %vm425 = vcmask 326660
    %vm426 = vmor %vm425, %vm424
    %427 = vst.msk [vmem:[#allocation6] sm:$0xff] %vm426, %v420
    %vm428 = vcmask 1043328
    %vm429 = vcmask 325636
    %vm430 = vmor %vm429, %vm428
    %431 = vst.msk [vmem:[#allocation6 + $0x8] sm:$0x77] %vm430, %v421
    %v432 = vld [vmem:[#allocation6] sm:$0xff]
    %v433 = vld [vmem:[#allocation6 + $0x8] sm:$0xff]
    %v434 = vld [vmem:[%s3] sm:$0xf]
    %v435 = vld [vmem:[%s3 + $0x4] sm:$0xf]
    %v436 = vld [vmem:[%s3 + $0x8] sm:$0xf]
    %v437 = vld [vmem:[%s3 + $0xc] sm:$0xf]
    %v438 = vld [vmem:[%s3 + $0x10] sm:$0xf]
    %v439 = vld [vmem:[%s3 + $0x14] sm:$0xf]
    %v440 = vld [vmem:[%s3 + $0x18] sm:$0xf]
    %v441 = vld [vmem:[%s3 + $0x1c] sm:$0xf]
    %v442 = vld [vmem:[%s3 + $0x20] sm:$0xf]
    %v443 = vld [vmem:[%s3 + $0x24] sm:$0xf]
    %v444 = vld [vmem:[%s3 + $0x28] sm:$0xf]
    %v445 = vld [vmem:[%s3 + $0x2c] sm:$0xf]
    %v446 = vld [vmem:[%s3 + $0x30] sm:$0xf]
    %v447 = vld [vmem:[%s3 + $0x34] sm:$0xf]
    %v448 = vld [vmem:[%s3 + $0x38] sm:$0xf]
    %v449 = vld [vmem:[%s3 + $0x3c] sm:$0xf]
    %v450 = vld [vmem:[%s3 + $0x40] sm:$0xf]
    %v451 = vld [vmem:[%s3 + $0x44] sm:$0xf]
    %v452 = vld [vmem:[%s3 + $0x48] sm:$0xf]
    %v453 = vld [vmem:[%s3 + $0x4c] sm:$0xf]
    %v454 = vld [vmem:[%s3 + $0x50] sm:$0xf]
    %v455 = vld [vmem:[%s4] sm:$0x1]
    %v457 = vperm.slane %v455, 0
    %v461 = vunpack.c.l.b16 %v432
    %v462 = vunpack.c.h.b16 %v432
    %v463 = vunpack.c.l.b16 %v433
    %v464 = vunpack.c.h.b16 %v433
    %v465 = vpack.c.b16 %v463, %v461
    %v466 = vpack.c.b16 %v464, %v462
    %v489 = vunpack.c.l.b16 %v434
    %v490 = vunpack.c.l.b16 %v435
    %v491 = vunpack.c.l.b16 %v436
    %v492 = vunpack.c.l.b16 %v437
    %v493 = vunpack.c.l.b16 %v438
    %v494 = vunpack.c.l.b16 %v439
    %v495 = vunpack.c.l.b16 %v440
    %v496 = vunpack.c.l.b16 %v441
    %v497 = vunpack.c.l.b16 %v442
    %v498 = vunpack.c.l.b16 %v443
    %v499 = vunpack.c.l.b16 %v444
    %v500 = vunpack.c.l.b16 %v445
    %v501 = vunpack.c.l.b16 %v446
    %v502 = vunpack.c.l.b16 %v447
    %v503 = vunpack.c.l.b16 %v448
    %v504 = vunpack.c.l.b16 %v449
    %v505 = vunpack.c.l.b16 %v450
    %v506 = vunpack.c.l.b16 %v451
    %v507 = vunpack.c.l.b16 %v452
    %v508 = vunpack.c.l.b16 %v453
    %v509 = vunpack.c.l.b16 %v454
    %v510 = vpack.c.b16 %v490, %v489
    %v511 = vpack.c.b16 %v492, %v491
    %v512 = vpack.c.b16 %v494, %v493
    %v513 = vpack.c.b16 %v496, %v495
    %v514 = vpack.c.b16 %v498, %v497
    %v515 = vpack.c.b16 %v500, %v499
    %v516 = vpack.c.b16 %v502, %v501
    %v517 = vpack.c.b16 %v504, %v503
    %v518 = vpack.c.b16 %v506, %v505
    %v519 = vpack.c.b16 %v508, %v507
    %v520 = vpack.c.b16 %v509, %v509
    %vm531 = vcmask 326656
    %v533 = vsel %vm531, %v466, 0
    %vm535 = vcmask 1043456
    %v537 = vsel %vm535, %v520, 0
    %539 = vmatpush.bf16.msra.mxu0 %v517
    %540 = vmatpush.bf16.msra.mxu0 %v516
    %541 = vmatpush.bf16.msra.mxu0 %v515
    %542 = vmatpush.bf16.msra.mxu0 %v514
    %543 = vmatpush.bf16.msra.mxu0 %v513
    %544 = vmatpush.bf16.msra.mxu0 %v512
    %545 = vmatpush.bf16.msra.mxu0 %v511
    %546 = vmatpush.bf16.msra.mxu0 %v510
    %547 = vmatmul.bf16.gmra.mxu0 %v465
    %v548 = vpop.f32.mrf.mxu0
    %v549 = vadd.f32 %v457, %v548
    %v550 = vpop.f32.mrf.mxu0
    %v551 = vadd.f32 %v457, %v550
    %552 = vdwg.mxu0
    %553 = vmatpush.bf16.msra.mxu0 0
    %554 = vmatpush.bf16.msra.mxu0 0
    %555 = vmatpush.bf16.msra.mxu0 0
    %556 = vmatpush.bf16.msra.mxu0 0
    %557 = vmatpush.bf16.msra.mxu0 0
    %558 = vmatpush.bf16.msra.mxu0 %v537
    %559 = vmatpush.bf16.msra.mxu0 %v519
    %560 = vmatpush.bf16.msra.mxu0 %v518
    %561 = vmatmul.bf16.gmra.mxu0 %v533
    %v562 = vpop.f32.mrf.mxu0
    %v563 = vadd.f32 %v549, %v562
    %v564 = vpop.f32.mrf.mxu0
    %v565 = vadd.f32 %v551, %v564
    %566 = vdwg.mxu0
    %v567 = vmax.f32 %v563, 0.0
    %v568 = vmax.f32 %v565, 0.0
    %vm569 = vcmask 261120
    %570 = vst.msk [vmem:[#allocation7] sm:$0xff] %vm569, %v567
    %571 = vst.msk [vmem:[#allocation7 + $0x8] sm:$0xff] %vm569, %v568
    %v572 = vld [vmem:[#allocation7] sm:$0xff]
    %v573 = vld [vmem:[#allocation7 + $0x8] sm:$0xff]
    %576 = vrot.lane.b32.xlu0 %v572, 112
    %v577 = vpop.permute.xlu0 %576
    %578 = vrot.lane.b32.xlu0 %v573, 112
    %v579 = vpop.permute.xlu0 %578
    %v582 = vmax.f32 %v572, %v577
    %v583 = vmax.f32 %v573, %v579
    %vm584 = vcmask 130048
    %585 = vst.msk [vmem:[#allocation8] sm:$0xff] %vm584, %v582
    %586 = vst.msk [vmem:[#allocation8 + $0x8] sm:$0xff] %vm584, %v583
    %v587 = vld [vmem:[#allocation8] ss:$2 sm:$0xff]
    %s588 = scalar_lea.vmem [#allocation8], 1
    %v589 = vld [vmem:[%s588] ss:$2 sm:$0xff]
    %v590 = vmax.f32 %v587, %v589
    %591 = vst.msk [vmem:[#allocation9] sm:$0xff] %vm584, %v590
    %v592 = vld [vmem:[#allocation9] ss:$4 sm:$0x3]
    %v593 = vld [vmem:[%s5] sm:$0xff]
    %v594 = vld [vmem:[%s5 + $0x8] sm:$0xff]
    %v595 = vld [vmem:[%s6] sm:$0x1]
    %v597 = vperm.slane %v595, 0
    %v600 = vsel %vm584, %v592, 0
    %602 = vmatpush.msra.mxu0 0.0
    %603 = vmatpush.msra.mxu0 0.0
    %604 = vmatpush.msra.mxu0 0.0
    %605 = vmatpush.msra.mxu0 0.0
    %606 = vmatpush.msra.mxu0 0.0
    %607 = vmatpush.msra.mxu0 0.0
    %608 = vmatpush.msra.mxu0 0.0
    %609 = vmatpush.msra.mxu0 0.0
    %610 = vmatpush.msra.mxu0 0.0
    %611 = vmatpush.msra.mxu0 0.0
    %612 = vmatpush.msra.mxu0 0.0
    %613 = vmatpush.msra.mxu0 0.0
    %614 = vmatpush.msra.mxu0 0.0
    %615 = vmatpush.msra.mxu0 0.0
    %616 = vmatpush.msra.mxu0 %v594
    %617 = vmatpush.msra.mxu0 %v593
    %618 = vmatmul.f32.gmra.mxu0 %v600
    %v619 = vpop.f32.mrf.mxu0
    %v620 = vadd.f32 %v597, %v619
    %621 = vdwg.mxu0
    %s622 = scalar_lea.vmem [#allocation9], 1
    %v623 = vld [vmem:[%s622] ss:$4 sm:$0x3]
    %s624 = scalar_lea.vmem %s5, 16
    %v625 = vld [vmem:[%s624] sm:$0xff]
    %v626 = vld [vmem:[%s624 + $0x8] sm:$0xff]
    %v628 = vsel %vm584, %v623, 0
    %630 = vmatpush.msra.mxu0 0.0
    %631 = vmatpush.msra.mxu0 0.0
    %632 = vmatpush.msra.mxu0 0.0
    %633 = vmatpush.msra.mxu0 0.0
    %634 = vmatpush.msra.mxu0 0.0
    %635 = vmatpush.msra.mxu0 0.0
    %636 = vmatpush.msra.mxu0 0.0
    %637 = vmatpush.msra.mxu0 0.0
    %638 = vmatpush.msra.mxu0 0.0
    %639 = vmatpush.msra.mxu0 0.0
    %640 = vmatpush.msra.mxu0 0.0
    %641 = vmatpush.msra.mxu0 0.0
    %642 = vmatpush.msra.mxu0 0.0
    %643 = vmatpush.msra.mxu0 0.0
    %644 = vmatpush.msra.mxu0 %v626
    %645 = vmatpush.msra.mxu0 %v625
    %646 = vmatmul.f32.gmra.mxu0 %v628
    %v647 = vpop.f32.mrf.mxu0
    %v648 = vadd.f32 0.0, %v647
    %649 = vdwg.mxu0
    %v650 = vadd.f32 %v620, %v648
    %v651 = vmax.f32 %v650, 0.0
    %v652 = vld [vmem:[%s7] sm:$0xff]
    %v653 = vld [vmem:[%s7 + $0x8] sm:$0xff]
    %v654 = vld [vmem:[%s7 + $0x10] sm:$0xff]
    %v655 = vld [vmem:[%s7 + $0x18] sm:$0xff]
    %v656 = vld [vmem:[%s8] sm:$0x1]
    %v658 = vperm.slane %v656, 0
    %v661 = vsel %vm569, %v651, 0
    %663 = vmatpush.msra.mxu0 0.0
    %664 = vmatpush.msra.mxu0 0.0
    %665 = vmatpush.msra.mxu0 0.0
    %666 = vmatpush.msra.mxu0 0.0
    %667 = vmatpush.msra.mxu0 0.0
    %668 = vmatpush.msra.mxu0 0.0
    %669 = vmatpush.msra.mxu0 0.0
    %670 = vmatpush.msra.mxu0 0.0
    %671 = vmatpush.msra.mxu0 0.0
    %672 = vmatpush.msra.mxu0 0.0
    %673 = vmatpush.msra.mxu0 0.0
    %674 = vmatpush.msra.mxu0 0.0
    %675 = vmatpush.msra.mxu0 %v655
    %676 = vmatpush.msra.mxu0 %v654
    %677 = vmatpush.msra.mxu0 %v653
    %678 = vmatpush.msra.mxu0 %v652
    %679 = vmatmul.f32.gmra.mxu0 %v661
    %v680 = vpop.f32.mrf.mxu0
    %v681 = vadd.f32 %v658, %v680
    %682 = vdwg.mxu0
    %v683 = vmax.f32 %v681, 0.0
    %v684 = vld [vmem:[%s9] sm:$0xff]
    %v685 = vld [vmem:[%s9 + $0x8] sm:$0xff]
    %v686 = vld [vmem:[%s10] sm:$0x1]
    %v688 = vperm.slane %v686, 0
    %v691 = vsel %vm584, %v683, 0
    %693 = vmatpush.msra.mxu0 0.0
    %694 = vmatpush.msra.mxu0 0.0
    %695 = vmatpush.msra.mxu0 0.0
    %696 = vmatpush.msra.mxu0 0.0
    %697 = vmatpush.msra.mxu0 0.0
    %698 = vmatpush.msra.mxu0 0.0
    %699 = vmatpush.msra.mxu0 0.0
    %700 = vmatpush.msra.mxu0 0.0
    %701 = vmatpush.msra.mxu0 0.0
    %702 = vmatpush.msra.mxu0 0.0
    %703 = vmatpush.msra.mxu0 0.0
    %704 = vmatpush.msra.mxu0 0.0
    %705 = vmatpush.msra.mxu0 0.0
    %706 = vmatpush.msra.mxu0 0.0
    %707 = vmatpush.msra.mxu0 %v685
    %708 = vmatpush.msra.mxu0 %v684
    %709 = vmatmul.f32.gmra.mxu0 %v691
    %v710 = vpop.f32.mrf.mxu0
    %v711 = vadd.f32 %v688, %v710
    %712 = vdwg.mxu0
    %vm713 = vcmask 74752
    %714 = vst.msk [vmem:[#allocation10] sm:$0x3] %vm713, %v711
    // Predicated region
    $region46: #{simple_cnn_forward.1} parent=1 // pred_check
      _
    $region47: #{simple_cnn_forward.1} parent=1 // pred_check_branch
      %716 = sbr.rel (0) target = $region49
    $region48: #{simple_cnn_forward.1} parent=1 // pred_region
      %718 = vsyncadd [#allocation11], 0
      %s720 = sshll.u32 [#allocation10], 4
      %s721 = int_to_ptr.vmem [resolvable:$true] %s720
      %s722 = sshll.u32 %s11, 4
      %s723 = int_to_ptr.hbm [resolvable:$true] %s722
      %725 = dma.vmem_to_hbm [thread:$0]  %s721, 32, %s723, [#allocation11]
    $region49: #{simple_cnn_forward.1} parent=1 // pred_fallthru
      _
    // Predicated region
    $region50: #{simple_cnn_forward.1} parent=1 // pred_check
      _
    $region51: #{simple_cnn_forward.1} parent=1 // pred_check_branch
      %727 = sbr.rel (0) target = $region53
    $region52: #{simple_cnn_forward.1} parent=1 // pred_region
      %729 = dma.done [#allocation11], 32
    $region53: #{simple_cnn_forward.1} parent=1 // pred_fallthru
      _
    %730 = vsyncpa [#allocation11], 1

</llo_original>
